<compile_context>
chip_gen: v6e
topology: v6e:2x2x1
jax: 0.10.0
libtpu: 0.0.40
codegen_flags: <defaults>
</compile_context>

<pallas_src>
import functools

import jax
import jax.numpy as jnp
from jax.experimental import pallas as pl
from jax.experimental.pallas import tpu as pltpu

_MIB = 1024 * 1024


def _detector_kernel(*refs, fused):
    if fused:
        fdx_ref, pdx_ref, w1_ref, b1_ref, w2_ref, b2_ref, out_ref = refs
    else:
        fdx_ref, pdx_ref, w1a_ref, w1b_ref, b1_ref, w2_ref, b2_ref, out_ref = refs
    cdt = w2_ref.dtype  # bf16 compute dtype for the MXU

    if fused:
        # Small nc: lane-concat in VMEM (no HBM concat) + one full-K-depth dot.
        x = jnp.concatenate([fdx_ref[...].astype(cdt),
                             pdx_ref[...].astype(cdt)], axis=-1)
        h = jnp.dot(x, w1_ref[...], preferred_element_type=jnp.float32)
    else:
        # Default nc=512: cat([FDx, PDx]) @ W1 == FDx @ W1[:nc] + PDx @ W1[nc:]
        h = jnp.dot(fdx_ref[...].astype(cdt), w1a_ref[...],
                    preferred_element_type=jnp.float32)
        h = h + jnp.dot(pdx_ref[...].astype(cdt), w1b_ref[...],
                        preferred_element_type=jnp.float32)

    h = jnp.maximum(h + b1_ref[...], 0.0)     # bias + ReLU in f32 (v5e-safe)

    # Linear2 (padded output columns are zero-weight, sliced off by wrapper).
    y = jnp.dot(h.astype(cdt), w2_ref[...], preferred_element_type=jnp.float32)
    out_ref[...] = (y + b2_ref[...]).astype(out_ref.dtype)


def prepare_detector_params(w1, b1, w2, b2, compute_dtype=jnp.bfloat16):
    """One-time parameter prep (hoisted out of the per-call path):
       cast weights to bf16, split W1 only when the halves are MXU-K-deep,
       and pad W2/b2 columns up to a lane-dense multiple of 128."""
    D = w1.shape[0]
    nc = D // 2
    C = w2.shape[1]
    Cp = 128 * pl.cdiv(C, 128)
    if nc < 256:
        # Small nc: keep W1 whole; the kernel does a single K=D dot.
        w1_parts = (w1.astype(compute_dtype),)                       # (D, D)
    else:
        # Default nc: split so no HBM concat of the activations is needed.
        w1_parts = (w1[:nc, :].astype(compute_dtype),                # (nc, D)
                    w1[nc:, :].astype(compute_dtype))                # (nc, D)
    b1r = b1.astype(jnp.float32).reshape(1, D)                       # (1, D)
    w2p = jnp.zeros((D, Cp), compute_dtype).at[:, :C].set(w2.astype(compute_dtype))
    b2p = jnp.zeros((1, Cp), jnp.float32).at[0, :C].set(b2.astype(jnp.float32))
    return (w1_parts, b1r, w2p, b2p)


def _tpu_vmem_capacity_bytes():
    try:
        return int(pltpu.get_tpu_info().vmem_capacity_bytes)
    except Exception:
        return 64 * _MIB   # conservative (v7x-sized) fallback


@functools.partial(jax.jit, static_argnames=("c_number",))
def detector_forward(fdx, pdx, params, *, c_number):
    """fdx, pdx: (B, num_classes) f32 or bf16; params from prepare_detector_params."""
    w1_parts, b1, w2p, b2p = params
    fused = len(w1_parts) == 1           # static (pytree structure)
    B, nc = fdx.shape
    D = b1.shape[1]
    Cp = w2p.shape[1]
    act_bytes = fdx.dtype.itemsize

    # Generation-aware VMEM ceiling & maximum batch tile.
    vmem_cap = _tpu_vmem_capacity_bytes()
    if vmem_cap <= 64 * _MIB:            # v7x-class: 64 MiB per TensorCore
        tb_max, vmem_ceiling = 1024, 56 * _MIB
    else:                                # v5e / v6e: 128 MiB
        tb_max, vmem_ceiling = 2048, 100 * _MIB

    # Batch tiling: NO HBM padding — grid = cdiv(B, TB) and the ragged last
    # block uses Pallas' clipped partial-block reads/writes (rows independent).
    # For B <= tb_max split into >= 2 tiles so both v7x TensorCores get work.
    if B <= tb_max:
        TB = max(8, 8 * pl.cdiv(pl.cdiv(B, 2), 8))
    else:
        TB = tb_max
    grid = (pl.cdiv(B, TB),)

    flops = 2 * B * D * (D + Cp)
    bytes_accessed = (
        2 * B * nc * act_bytes                                    # FDx + PDx
        + sum(w.size * w.dtype.itemsize for w in w1_parts)        # W1 (bf16)
        + w2p.size * w2p.dtype.itemsize                           # W2 (bf16)
        + (D + Cp) * 4                                            # biases (f32)
        + B * Cp * 4                                              # out (f32)
    )

    # Explicit VMEM budget: double-buffered activation/output tiles, resident
    # (single-buffered) weights, and f32/bf16 intermediates, with 2x slack.
    w_bytes = (sum(w.size * w.dtype.itemsize for w in w1_parts)
               + w2p.size * w2p.dtype.itemsize + (D + Cp) * 4)
    tile_bytes = (2 * (2 * TB * nc * act_bytes)   # double-buffered FDx+PDx tiles
                  + 2 * (TB * Cp * 4)             # double-buffered output tiles
                  + TB * D * (4 + 2))             # f32 h + bf16 x/h copies
    vmem_limit = int(min(max(2 * (w_bytes + tile_bytes), 16 * _MIB), vmem_ceiling))

    # Constant-index weights/biases are fetched once -> single buffer is enough
    # (saves ~2x weight footprint of VMEM headroom on 64 MiB parts).
    resident = dict(pipeline_mode=pl.Buffered(1))
    in_specs = (
        [pl.BlockSpec((TB, nc), lambda i: (i, 0)),                  # FDx (streamed)
         pl.BlockSpec((TB, nc), lambda i: (i, 0))]                  # PDx (streamed)
        + [pl.BlockSpec(w.shape, lambda i: (0, 0), **resident) for w in w1_parts]
        + [pl.BlockSpec((1, D), lambda i: (0, 0), **resident),     # b1
           pl.BlockSpec((D, Cp), lambda i: (0, 0), **resident),    # W2 (padded)
           pl.BlockSpec((1, Cp), lambda i: (0, 0), **resident)]    # b2 (padded)
    )

    out_padded = pl.pallas_call(
        functools.partial(_detector_kernel, fused=fused),
        out_shape=jax.ShapeDtypeStruct((B, Cp), jnp.float32),
        grid_spec=pltpu.PrefetchScalarGridSpec(
            num_scalar_prefetch=0,
            grid=grid,
            in_specs=in_specs,
            out_specs=pl.BlockSpec((TB, Cp), lambda i: (i, 0)),
        ),
        compiler_params=pltpu.CompilerParams(
            dimension_semantics=("parallel",),   # batch tiles shard across TCs
            vmem_limit_bytes=vmem_limit,
        ),
        cost_estimate=pl.CostEstimate(
            flops=flops, transcendentals=0, bytes_accessed=bytes_accessed),
    )(fdx, pdx, *w1_parts, b1, w2p, b2p)

    return out_padded[:, :c_number]


def _init_linear(kw, kb, fan_in, fan_out, dtype=jnp.float32):
    # Matches torch.nn.Linear default init: U(-1/sqrt(fan_in), 1/sqrt(fan_in)).
    bound = 1.0 / jnp.sqrt(jnp.asarray(fan_in, dtype))
    w = jax.random.uniform(kw, (fan_in, fan_out), dtype, -bound, bound)  # (in, out)
    b = jax.random.uniform(kb, (fan_out,), dtype, -bound, bound)
    return w, b


if __name__ == "__main__":
    num_classes = 64     # small synthetic config (module default is 512)
    C_Number = 3
    B = 20               # not a tile multiple -> exercises ragged last block
    D = 2 * num_classes

    key = jax.random.PRNGKey(0)
    k_fdx, k_pdx, k_w1, k_b1, k_w2, k_b2 = jax.random.split(key, 6)

    FDx = jax.random.normal(k_fdx, (B, num_classes), jnp.float32)
    PDx = jax.random.normal(k_pdx, (B, num_classes), jnp.float32)

    w1, b1 = _init_linear(k_w1, k_b1, D, D)
    w2, b2 = _init_linear(k_w2, k_b2, D, C_Number)

    params = prepare_detector_params(w1, b1, w2, b2)   # one-time split/cast/pad

    # Producer hands the kernel bf16 activations (halves streamed HBM bytes on
    # the bandwidth-bound v6e path); accumulation stays f32 inside the kernel.
    FDx_bf16 = FDx.astype(jnp.bfloat16)
    PDx_bf16 = PDx.astype(jnp.bfloat16)

    out = detector_forward(FDx_bf16, PDx_bf16, params, c_number=C_Number)
    jax.block_until_ready(out)

    # Pure-JAX reference mirroring the bf16 weight/activation quantization.
    def q(a):
        return a.astype(jnp.bfloat16).astype(jnp.float32)

    x = jnp.concatenate([FDx, PDx], axis=1)
    h = jnp.maximum(q(x) @ q(w1) + b1, 0.0)
    ref = q(h) @ q(w2) + b2

    assert out.shape == (B, C_Number)
    assert jnp.allclose(out, ref, atol=1e-2, rtol=1e-2), (
        "max abs diff = %f" % float(jnp.max(jnp.abs(out - ref))))

    # Loose sanity check against the full-f32 reference as well.
    ref_f32 = jnp.maximum(x @ w1 + b1, 0.0) @ w2 + b2
    assert jnp.allclose(out, ref_f32, atol=5e-2, rtol=5e-2)

    print("KERNEL_OK")
</pallas_src>

<mosaic_0001>
module attributes {stable_mosaic.version = 11 : i64} {
  func.func @_detector_kernel(%arg0: i32, %arg1: memref<16x64xbf16, #tpu.memory_space<vmem>>, %arg2: memref<16x64xbf16, #tpu.memory_space<vmem>>, %arg3: memref<128x128xbf16, #tpu.memory_space<vmem>>, %arg4: memref<1x128xf32, #tpu.memory_space<vmem>>, %arg5: memref<128x128xbf16, #tpu.memory_space<vmem>>, %arg6: memref<1x128xf32, #tpu.memory_space<vmem>>, %arg7: memref<16x128xf32, #tpu.memory_space<vmem>>) attributes {dimension_semantics = [#tpu.dimension_semantics<parallel>], iteration_bounds = array<i64: 2>, scalar_prefetch = 0 : i64, scratch_operands = 0 : i64, tpu.core_type = #tpu.core_type<tc>, window_params = [{transform_indices = @transform_0, window_bounds = array<i64: 16, 64>}, {transform_indices = @transform_1, window_bounds = array<i64: 16, 64>}, {pipeline_mode = #tpu.pipeline_mode<synchronous>, transform_indices = @transform_2, window_bounds = array<i64: 128, 128>}, {pipeline_mode = #tpu.pipeline_mode<synchronous>, transform_indices = @transform_3, window_bounds = array<i64: 1, 128>}, {pipeline_mode = #tpu.pipeline_mode<synchronous>, transform_indices = @transform_4, window_bounds = array<i64: 128, 128>}, {pipeline_mode = #tpu.pipeline_mode<synchronous>, transform_indices = @transform_5, window_bounds = array<i64: 1, 128>}, {transform_indices = @transform_6, window_bounds = array<i64: 16, 128>}]} {
    %c0 = arith.constant 0 : index
    %c0_0 = arith.constant 0 : index
    %0 = vector.load %arg1[%c0, %c0_0] : memref<16x64xbf16, #tpu.memory_space<vmem>>, vector<16x64xbf16>
    %c0_1 = arith.constant 0 : index
    %c0_2 = arith.constant 0 : index
    %1 = vector.load %arg2[%c0_1, %c0_2] : memref<16x64xbf16, #tpu.memory_space<vmem>>, vector<16x64xbf16>
    %2 = tpu.concatenate %0, %1 in 1 : vector<16x64xbf16>, vector<16x64xbf16> -> vector<16x128xbf16>
    %c0_3 = arith.constant 0 : index
    %c0_4 = arith.constant 0 : index
    %3 = vector.load %arg3[%c0_3, %c0_4] : memref<128x128xbf16, #tpu.memory_space<vmem>>, vector<128x128xbf16>
    %cst = arith.constant dense<0.000000e+00> : vector<16x128xf32>
    %4 = tpu.matmul %2, %3, %cst {dimension_numbers = #tpu.dot_dimension_numbers<[1], [0], [0], [1], [0, 0, 1, 1], [], []>} : vector<16x128xbf16>, vector<128x128xbf16>, vector<16x128xf32> -> vector<16x128xf32>
    %c0_5 = arith.constant 0 : index
    %c0_6 = arith.constant 0 : index
    %5 = vector.load %arg4[%c0_5, %c0_6] : memref<1x128xf32, #tpu.memory_space<vmem>>, vector<1x128xf32>
    %6 = vector.broadcast %5 : vector<1x128xf32> to vector<16x128xf32>
    %7 = arith.addf %4, %6 : vector<16x128xf32>
    %cst_7 = arith.constant 0.000000e+00 : f32
    %8 = vector.broadcast %cst_7 : f32 to vector<16x128xf32>
    %9 = arith.maximumf %7, %8 : vector<16x128xf32>
    %10 = arith.truncf %9 : vector<16x128xf32> to vector<16x128xbf16>
    %c0_8 = arith.constant 0 : index
    %c0_9 = arith.constant 0 : index
    %11 = vector.load %arg5[%c0_8, %c0_9] : memref<128x128xbf16, #tpu.memory_space<vmem>>, vector<128x128xbf16>
    %cst_10 = arith.constant dense<0.000000e+00> : vector<16x128xf32>
    %12 = tpu.matmul %10, %11, %cst_10 {dimension_numbers = #tpu.dot_dimension_numbers<[1], [0], [0], [1], [0, 0, 1, 1], [], []>} : vector<16x128xbf16>, vector<128x128xbf16>, vector<16x128xf32> -> vector<16x128xf32>
    %c0_11 = arith.constant 0 : index
    %c0_12 = arith.constant 0 : index
    %13 = vector.load %arg6[%c0_11, %c0_12] : memref<1x128xf32, #tpu.memory_space<vmem>>, vector<1x128xf32>
    %14 = vector.broadcast %13 : vector<1x128xf32> to vector<16x128xf32>
    %15 = arith.addf %12, %14 : vector<16x128xf32>
    %c0_13 = arith.constant 0 : index
    %c0_14 = arith.constant 0 : index
    %16 = vector.load %arg7[%c0_13, %c0_14] : memref<16x128xf32, #tpu.memory_space<vmem>>, vector<16x128xf32>
    tpu.vector_store %arg7[%c0_13, %c0_14], %15 {strides = array<i32>} : memref<16x128xf32, #tpu.memory_space<vmem>>, vector<16x128xf32>,
    return
  }
  func.func @transform_0(%arg0: i32) -> (i32, i32) {
    %c0_i32 = arith.constant 0 : i32
    %c0_i32_0 = arith.constant 0 : i32
    return %arg0, %c0_i32 : i32, i32
  }
  func.func @transform_1(%arg0: i32) -> (i32, i32) {
    %c0_i32 = arith.constant 0 : i32
    %c0_i32_0 = arith.constant 0 : i32
    return %arg0, %c0_i32 : i32, i32
  }
  func.func @transform_2(%arg0: i32) -> (i32, i32) {
    %c0_i32 = arith.constant 0 : i32
    %c0_i32_0 = arith.constant 0 : i32
    %c0_i32_1 = arith.constant 0 : i32
    return %c0_i32, %c0_i32_0 : i32, i32
  }
  func.func @transform_3(%arg0: i32) -> (i32, i32) {
    %c0_i32 = arith.constant 0 : i32
    %c0_i32_0 = arith.constant 0 : i32
    %c0_i32_1 = arith.constant 0 : i32
    return %c0_i32, %c0_i32_0 : i32, i32
  }
  func.func @transform_4(%arg0: i32) -> (i32, i32) {
    %c0_i32 = arith.constant 0 : i32
    %c0_i32_0 = arith.constant 0 : i32
    %c0_i32_1 = arith.constant 0 : i32
    return %c0_i32, %c0_i32_0 : i32, i32
  }
  func.func @transform_5(%arg0: i32) -> (i32, i32) {
    %c0_i32 = arith.constant 0 : i32
    %c0_i32_0 = arith.constant 0 : i32
    %c0_i32_1 = arith.constant 0 : i32
    return %c0_i32, %c0_i32_0 : i32, i32
  }
  func.func @transform_6(%arg0: i32) -> (i32, i32) {
    %c0_i32 = arith.constant 0 : i32
    %c0_i32_0 = arith.constant 0 : i32
    return %arg0, %c0_i32 : i32, i32
  }
}

</mosaic_0001>

<llo_original>
// kernel: detector_forward.1
$region0: #{detector_forward.1}
  #allocation0 [shape = 'u32[]', space=smem, size = 0x4, offset = 0x4, fixed_abs, tag = 'smem constant byte address 0x4 - core index']
  #allocation1 [shape = 'u32[144,128]{1,0:T(1,128)}', space=vmem, size = 0x12000, scoped, tag = 'internal scratch']
  %s0 = inlined_call_operand.hbm [shape: bf16[20,64], index: 0, kind: input, shape index: {}]
  %s1 = inlined_call_operand.hbm [shape: bf16[20,64], index: 1, kind: input, shape index: {}]
  %s2 = inlined_call_operand.hbm [shape: bf16[128,128], index: 2, kind: input, shape index: {}]
  %s3 = inlined_call_operand.vmem [shape: f32[1,128], index: 3, kind: input, shape index: {}]
  %s4 = inlined_call_operand.hbm [shape: bf16[128,128], index: 4, kind: input, shape index: {}]
  %s5 = inlined_call_operand.vmem [shape: f32[1,128], index: 5, kind: input, shape index: {}]
  %s6 = inlined_call_operand.vmem [shape: f32[20,128], index: 6, kind: output, shape index: {}]
  %s7 = sld [smem:[#allocation0]]
  $region121: #{detector_forward.1} parent=0
    _
  %s9 = ssub.s32 1, %s7
  %s10 = scalar_select 0, %s9, %s7
  $region1: #{detector_forward.1} parent=0
    #allocation2 [shape = 'u8[8192]{0}', space=vmem, size = 0x2000, scoped, tag = 'input window, operand 0']
    #allocation3 [shape = 's32[2]{0}', space=sflag, size = 0x8, scoped, tag = 'scoped memory for detector_forward.1']
    #allocation4 [shape = 'u8[8192]{0}', space=vmem, size = 0x2000, scoped, tag = 'input window, operand 1']
    #allocation5 [shape = 's32[2]{0}', space=sflag, size = 0x8, scoped, tag = 'scoped memory for detector_forward.1']
    #allocation6 [shape = 'u8[32768]{0}', space=vmem, size = 0x8000, scoped, tag = 'input window, operand 2, single buffered']
    #allocation7 [shape = 'u8[32768]{0}', space=vmem, size = 0x8000, scoped, tag = 'input window, operand 4, single buffered']
    #allocation8 [shape = 's32[1]{0}', space=sflag, size = 0x4, scoped, tag = 'scoped memory for detector_forward.1']
    #allocation9 [shape = 'u8[16384]{0}', space=vmem, size = 0x4000, scoped, tag = 'output window, operand 0']
    %11 = vsyncpa [#allocation3], 0
    %s12 = scalar_lea.sflag [#allocation3], 1
    %13 = vsyncpa %s12, 0
    %14 = vsyncpa [#allocation5], 0
    %s15 = scalar_lea.sflag [#allocation5], 1
    %16 = vsyncpa %s15, 0
    %17 = vsyncpa [#allocation8], 0
    loop: start=0, step=1, limit=4
    $region2: #{detector_forward.1} parent=1 // loop_pre_header
      _
    $region3: #{detector_forward.1} parent=1 // loop_header
      %s19 = sphi 0, %s23
      %p20 = scmp.ge.s32.totalorder %s19, 4
      %s29 = sphi 0, %s31
      %s32 = sphi 0, %s29
      %s33 = sphi 0, %s32
      %s49 = sphi 0, %s33
      %s55 = sphi 0, %s57
      %s58 = sphi 0, %s55
      %s59 = sphi 0, %s58
      %s75 = sphi 0, %s59
      %s79 = sphi 0, %s79
      %s81 = sphi 0, %s79
      %s82 = sphi 0, %s81
      %s96 = sphi 0, %s82
      %s100 = sphi 0, %s100
      %s102 = sphi 0, %s100
      %s103 = sphi 0, %s102
      %s117 = sphi 0, %s103
      %s121 = sphi 0, %s121
      %s123 = sphi 0, %s121
      %s124 = sphi 0, %s123
      %s138 = sphi 0, %s124
      %s142 = sphi 0, %s142
      %s144 = sphi 0, %s142
      %s145 = sphi 0, %s144
      %s159 = sphi 0, %s145
      %s165 = sphi 0, %s167
      %s168 = sphi 0, %s165
      %s169 = sphi 0, %s168
      %s185 = sphi 0, %s169
    $region4: #{detector_forward.1} parent=1 // loop_header_branch
      %22 = sbr.rel (%p20) target = $region8
    $region5: #{detector_forward.1} parent=1 // loop_body
      %s24 = ssub.s32 %s19, 1
      %s25 = ssub.s32 %s19, 2
      %s26 = sadd.s32 %s19, 1
      %s27 = ssub.s32 %s19, %s26
      %p28 = scmp.eq.s32.totalorder %s27, 0
      %s30 = sadd.s32 %s29, 1
      %s31 = scalar_select %p28, %s29, %s30
      %p34 = pneg %p28
      %p35 = scmp.eq.s32.totalorder %s19, 1
      %p36 = por %p34, %p35
      %p37 = scmp.ne.s32.totalorder %s29, %s32
      %p38 = scmp.eq.s32.totalorder %s19, 0
      %p39 = por %p37, %p38
      %p40 = scmp.ne.s32.totalorder %s29, %s32
      %p41 = scmp.eq.s32.totalorder %s24, 1
      %p42 = por %p40, %p41
      %p43 = scmp.ne.s32.totalorder %s32, %s33
      %p44 = scmp.eq.s32.totalorder %s24, 0
      %p45 = por %p43, %p44
      %p46 = scmp.ne.s32.totalorder %s32, %s33
      %p47 = scmp.eq.s32.totalorder %s25, 1
      %p48 = por %p46, %p47
      %p50 = scmp.ne.s32.totalorder %s33, %s49
      %p51 = scmp.eq.s32.totalorder %s25, 0
      %p52 = por %p50, %p51
      %s53 = ssub.s32 %s19, %s26
      %p54 = scmp.eq.s32.totalorder %s53, 0
      %s56 = sadd.s32 %s55, 1
      %s57 = scalar_select %p54, %s55, %s56
      %p60 = pneg %p54
      %p61 = scmp.eq.s32.totalorder %s19, 1
      %p62 = por %p60, %p61
      %p63 = scmp.ne.s32.totalorder %s55, %s58
      %p64 = scmp.eq.s32.totalorder %s19, 0
      %p65 = por %p63, %p64
      %p66 = scmp.ne.s32.totalorder %s55, %s58
      %p67 = scmp.eq.s32.totalorder %s24, 1
      %p68 = por %p66, %p67
      %p69 = scmp.ne.s32.totalorder %s58, %s59
      %p70 = scmp.eq.s32.totalorder %s24, 0
      %p71 = por %p69, %p70
      %p72 = scmp.ne.s32.totalorder %s58, %s59
      %p73 = scmp.eq.s32.totalorder %s25, 1
      %p74 = por %p72, %p73
      %p76 = scmp.ne.s32.totalorder %s59, %s75
      %p77 = scmp.eq.s32.totalorder %s25, 0
      %p78 = por %p76, %p77
      %s80 = sadd.s32 %s79, 1
      %p83 = scmp.eq.s32.totalorder %s19, 1
      %p84 = scmp.ne.s32.totalorder %s79, %s81
      %p85 = scmp.eq.s32.totalorder %s19, 0
      %p86 = por %p84, %p85
      %p87 = scmp.ne.s32.totalorder %s79, %s81
      %p88 = scmp.eq.s32.totalorder %s24, 1
      %p89 = por %p87, %p88
      %p90 = scmp.ne.s32.totalorder %s81, %s82
      %p91 = scmp.eq.s32.totalorder %s24, 0
      %p92 = por %p90, %p91
      %p93 = scmp.ne.s32.totalorder %s81, %s82
      %p94 = scmp.eq.s32.totalorder %s25, 1
      %p95 = por %p93, %p94
      %p97 = scmp.ne.s32.totalorder %s82, %s96
      %p98 = scmp.eq.s32.totalorder %s25, 0
      %p99 = por %p97, %p98
      %s101 = sadd.s32 %s100, 1
      %p104 = scmp.eq.s32.totalorder %s19, 1
      %p105 = scmp.ne.s32.totalorder %s100, %s102
      %p106 = scmp.eq.s32.totalorder %s19, 0
      %p107 = por %p105, %p106
      %p108 = scmp.ne.s32.totalorder %s100, %s102
      %p109 = scmp.eq.s32.totalorder %s24, 1
      %p110 = por %p108, %p109
      %p111 = scmp.ne.s32.totalorder %s102, %s103
      %p112 = scmp.eq.s32.totalorder %s24, 0
      %p113 = por %p111, %p112
      %p114 = scmp.ne.s32.totalorder %s102, %s103
      %p115 = scmp.eq.s32.totalorder %s25, 1
      %p116 = por %p114, %p115
      %p118 = scmp.ne.s32.totalorder %s103, %s117
      %p119 = scmp.eq.s32.totalorder %s25, 0
      %p120 = por %p118, %p119
      %s122 = sadd.s32 %s121, 1
      %p125 = scmp.eq.s32.totalorder %s19, 1
      %p126 = scmp.ne.s32.totalorder %s121, %s123
      %p127 = scmp.eq.s32.totalorder %s19, 0
      %p128 = por %p126, %p127
      %p129 = scmp.ne.s32.totalorder %s121, %s123
      %p130 = scmp.eq.s32.totalorder %s24, 1
      %p131 = por %p129, %p130
      %p132 = scmp.ne.s32.totalorder %s123, %s124
      %p133 = scmp.eq.s32.totalorder %s24, 0
      %p134 = por %p132, %p133
      %p135 = scmp.ne.s32.totalorder %s123, %s124
      %p136 = scmp.eq.s32.totalorder %s25, 1
      %p137 = por %p135, %p136
      %p139 = scmp.ne.s32.totalorder %s124, %s138
      %p140 = scmp.eq.s32.totalorder %s25, 0
      %p141 = por %p139, %p140
      %s143 = sadd.s32 %s142, 1
      %p146 = scmp.eq.s32.totalorder %s19, 1
      %p147 = scmp.ne.s32.totalorder %s142, %s144
      %p148 = scmp.eq.s32.totalorder %s19, 0
      %p149 = por %p147, %p148
      %p150 = scmp.ne.s32.totalorder %s142, %s144
      %p151 = scmp.eq.s32.totalorder %s24, 1
      %p152 = por %p150, %p151
      %p153 = scmp.ne.s32.totalorder %s144, %s145
      %p154 = scmp.eq.s32.totalorder %s24, 0
      %p155 = por %p153, %p154
      %p156 = scmp.ne.s32.totalorder %s144, %s145
      %p157 = scmp.eq.s32.totalorder %s25, 1
      %p158 = por %p156, %p157
      %p160 = scmp.ne.s32.totalorder %s145, %s159
      %p161 = scmp.eq.s32.totalorder %s25, 0
      %p162 = por %p160, %p161
      %s163 = ssub.s32 %s19, %s26
      %p164 = scmp.eq.s32.totalorder %s163, 0
      %s166 = sadd.s32 %s165, 1
      %s167 = scalar_select %p164, %s165, %s166
      %p170 = pneg %p164
      %p171 = scmp.eq.s32.totalorder %s19, 1
      %p172 = por %p170, %p171
      %p173 = scmp.ne.s32.totalorder %s165, %s168
      %p174 = scmp.eq.s32.totalorder %s19, 0
      %p175 = por %p173, %p174
      %p176 = scmp.ne.s32.totalorder %s165, %s168
      %p177 = scmp.eq.s32.totalorder %s24, 1
      %p178 = por %p176, %p177
      %p179 = scmp.ne.s32.totalorder %s168, %s169
      %p180 = scmp.eq.s32.totalorder %s24, 0
      %p181 = por %p179, %p180
      %p182 = scmp.ne.s32.totalorder %s168, %s169
      %p183 = scmp.eq.s32.totalorder %s25, 1
      %p184 = por %p182, %p183
      %p186 = scmp.ne.s32.totalorder %s169, %s185
      %p187 = scmp.eq.s32.totalorder %s25, 0
      %p188 = por %p186, %p187
      %p189 = scmp.le.s32.totalorder 1, %s19
      %p190 = scmp.lt.s32.totalorder %s19, 3
      %p191 = pnand %p189, %p190
      %p192 = pneg %p191
      // Predicated region
      $region9: #{detector_forward.1} parent=5 // pred_check
        _
      $region10: #{detector_forward.1} parent=5 // pred_check_branch
        %194 = sbr.rel (%p191) target = $region12
      $region11: #{detector_forward.1} parent=5 // pred_region
        %s195 = ssub.s32 %s19, 1
        // Predicated region
        $region13: #{detector_forward.1} parent=11 // pred_check
          %p196 = pneg %p92
        $region14: #{detector_forward.1} parent=11 // pred_check_branch
          %198 = sbr.rel (%p196) target = $region16
        $region15: #{detector_forward.1} parent=11 // pred_region
          %s200 = ssub.s32 1024, 1024
          %201 = vsyncadd [#allocation5], %s200
          %s202 = sshll.u32 [#allocation6], 4
          %s203 = int_to_ptr.vmem [resolvable:$true] %s202
          %208 = dma.hbm_to_vmem [thread:$0]  %s2, 1024, %s203, [#allocation5], 64, 64, 4
        $region16: #{detector_forward.1} parent=11 // pred_fallthru
          _
        // Predicated region
        $region17: #{detector_forward.1} parent=11 // pred_check
          %p209 = pneg %p113
        $region18: #{detector_forward.1} parent=11 // pred_check_branch
          %211 = sbr.rel (%p209) target = $region20
        $region19: #{detector_forward.1} parent=11 // pred_region
          _
        $region20: #{detector_forward.1} parent=11 // pred_fallthru
          _
        // Predicated region
        $region21: #{detector_forward.1} parent=11 // pred_check
          %p212 = pneg %p134
        $region22: #{detector_forward.1} parent=11 // pred_check_branch
          %214 = sbr.rel (%p212) target = $region24
        $region23: #{detector_forward.1} parent=11 // pred_region
          %s216 = ssub.s32 1024, 1024
          %217 = vsyncadd [#allocation8], %s216
          %s218 = sshll.u32 [#allocation7], 4
          %s219 = int_to_ptr.vmem [resolvable:$true] %s218
          %224 = dma.hbm_to_vmem [thread:$0]  %s4, 1024, %s219, [#allocation8], 64, 64, 4
        $region24: #{detector_forward.1} parent=11 // pred_fallthru
          _
        // Predicated region
        $region25: #{detector_forward.1} parent=11 // pred_check
          %p225 = pneg %p155
        $region26: #{detector_forward.1} parent=11 // pred_check_branch
          %227 = sbr.rel (%p225) target = $region28
        $region27: #{detector_forward.1} parent=11 // pred_region
          _
        $region28: #{detector_forward.1} parent=11 // pred_fallthru
          _
      $region12: #{detector_forward.1} parent=5 // pred_fallthru
        _
      %p228 = scmp.lt.s32.totalorder %s19, 2
      // Predicated region
      $region29: #{detector_forward.1} parent=5 // pred_check
        %p229 = pneg %p228
      $region30: #{detector_forward.1} parent=5 // pred_check_branch
        %231 = sbr.rel (%p229) target = $region32
      $region31: #{detector_forward.1} parent=5 // pred_region
        // Predicated region
        $region33: #{detector_forward.1} parent=31 // pred_check
          %p232 = pneg %p39
        $region34: #{detector_forward.1} parent=31 // pred_check_branch
          %234 = sbr.rel (%p232) target = $region36
        $region35: #{detector_forward.1} parent=31 // pred_region
          %s235 = sand.u32 %s29, 1
          %s236 = scalar_lea.sflag [#allocation3], %s235
          %s237 = sand.u32 %s29, 1
          %s238 = smul.addr %s237, 8
          %s239 = scalar_lea.vmem [#allocation2], %s238
          %s240 = smul.u32 2, %s19
          %s241 = ssub.s32 3, %s240
          %p242 = scmp.lt.s32.totalorder %s241, 2
          %s243 = scalar_select %p242, %s241, 2
          %s244 = smul.u32 64, %s243
          %s246 = ssub.s32 128, %s244
          %247 = vsyncadd %s236, %s246
          %p248 = scmp.ne.s32.totalorder 0, %s244
          %s249 = smul.addr %s240, 64
          %s250 = scalar_lea.hbm %s0, %s249
          %s251 = smul.u32 4, %s243
          %s252 = sshll.u32 %s239, 4
          %s253 = int_to_ptr.vmem [resolvable:$true] %s252
          %s254 = sshll.u32 %s251, 4
          %258 = dma.hbm_to_vmem [thread:$0]  (%p248), %s250, %s254, %s253, %s236, 64, 64, 4
        $region36: #{detector_forward.1} parent=31 // pred_fallthru
          _
        // Predicated region
        $region37: #{detector_forward.1} parent=31 // pred_check
          %p259 = pneg %p65
        $region38: #{detector_forward.1} parent=31 // pred_check_branch
          %261 = sbr.rel (%p259) target = $region40
        $region39: #{detector_forward.1} parent=31 // pred_region
          %s262 = sand.u32 %s19, 1
          %s263 = scalar_lea.sflag [#allocation5], %s262
          %s264 = sand.u32 %s55, 1
          %s265 = smul.addr %s264, 8
          %s266 = scalar_lea.vmem [#allocation4], %s265
          %s267 = smul.u32 2, %s19
          %s268 = ssub.s32 3, %s267
          %p269 = scmp.lt.s32.totalorder %s268, 2
          %s270 = scalar_select %p269, %s268, 2
          %s271 = smul.u32 64, %s270
          %s273 = ssub.s32 128, %s271
          %274 = vsyncadd %s263, %s273
          %p275 = scmp.ne.s32.totalorder 0, %s271
          %s276 = smul.addr %s267, 64
          %s277 = scalar_lea.hbm %s1, %s276
          %s278 = smul.u32 4, %s270
          %s279 = sshll.u32 %s266, 4
          %s280 = int_to_ptr.vmem [resolvable:$true] %s279
          %s281 = sshll.u32 %s278, 4
          %285 = dma.hbm_to_vmem [thread:$0]  (%p275), %s277, %s281, %s280, %s263, 64, 64, 4
        $region40: #{detector_forward.1} parent=31 // pred_fallthru
          _
      $region32: #{detector_forward.1} parent=5 // pred_fallthru
        _
      %p286 = scmp.le.s32.totalorder 1, %s19
      %p287 = scmp.lt.s32.totalorder %s19, 3
      %p288 = pnand %p286, %p287
      %p289 = pneg %p288
      // Predicated region
      $region41: #{detector_forward.1} parent=5 // pred_check
        _
      $region42: #{detector_forward.1} parent=5 // pred_check_branch
        %291 = sbr.rel (%p288) target = $region44
      $region43: #{detector_forward.1} parent=5 // pred_region
        %s292 = ssub.s32 %s19, 1
        %s293 = sand.u32 %s32, 1
        %s294 = scalar_lea.sflag [#allocation3], %s293
        %s295 = sand.u32 %s32, 1
        %s296 = smul.addr %s295, 8
        %s297 = scalar_lea.vmem [#allocation2], %s296
        // Predicated region
        $region45: #{detector_forward.1} parent=43 // pred_check
          %p298 = pneg %p45
        $region46: #{detector_forward.1} parent=43 // pred_check_branch
          %300 = sbr.rel (%p298) target = $region48
        $region47: #{detector_forward.1} parent=43 // pred_region
          %301 = dma.done %s294, 128
        $region48: #{detector_forward.1} parent=43 // pred_fallthru
          _
        %s302 = sand.u32 %s24, 1
        %s303 = scalar_lea.sflag [#allocation5], %s302
        %s304 = sand.u32 %s58, 1
        %s305 = smul.addr %s304, 8
        %s306 = scalar_lea.vmem [#allocation4], %s305
        // Predicated region
        $region49: #{detector_forward.1} parent=43 // pred_check
          %p307 = pneg %p71
        $region50: #{detector_forward.1} parent=43 // pred_check_branch
          %309 = sbr.rel (%p307) target = $region52
        $region51: #{detector_forward.1} parent=43 // pred_region
          %310 = dma.done %s303, 128
        $region52: #{detector_forward.1} parent=43 // pred_fallthru
          _
        // Predicated region
        $region53: #{detector_forward.1} parent=43 // pred_check
          %p311 = pneg %p92
        $region54: #{detector_forward.1} parent=43 // pred_check_branch
          %313 = sbr.rel (%p311) target = $region56
        $region55: #{detector_forward.1} parent=43 // pred_region
          %314 = dma.done [#allocation5], 1024
        $region56: #{detector_forward.1} parent=43 // pred_fallthru
          _
        // Predicated region
        $region57: #{detector_forward.1} parent=43 // pred_check
          %p315 = pneg %p134
        $region58: #{detector_forward.1} parent=43 // pred_check_branch
          %317 = sbr.rel (%p315) target = $region60
        $region59: #{detector_forward.1} parent=43 // pred_region
          %318 = dma.done [#allocation8], 1024
        $region60: #{detector_forward.1} parent=43 // pred_fallthru
          _
        %s319 = sand.u32 %s32, 1
        %s320 = scalar_lea.sflag [#allocation3], %s319
        %s321 = sand.u32 %s32, 1
        %s322 = smul.addr %s321, 8
        %s323 = scalar_lea.vmem [#allocation2], %s322
        %p324 = pneg %p45
        %p325 = pneg %p42
        %s326 = sand.u32 %s24, 1
        %s327 = scalar_lea.sflag [#allocation5], %s326
        %s328 = sand.u32 %s58, 1
        %s329 = smul.addr %s328, 8
        %s330 = scalar_lea.vmem [#allocation4], %s329
        %p331 = pneg %p71
        %p332 = pneg %p68
        %p333 = pneg %p92
        %p334 = pneg %p89
        %p335 = pneg %p113
        %p336 = pneg %p110
        %p337 = pneg %p134
        %p338 = pneg %p131
        %p339 = pneg %p155
        %p340 = pneg %p152
        %p341 = pneg %p181
        %p342 = pneg %p178
        %s343 = sand.u32 %s168, 1
        %s344 = sand.u32 %s168, 1
        %s345 = smul.addr %s344, 16
        %s346 = scalar_lea.vmem [#allocation9], %s345
        %s347 = smul.u32 2, %s24
        %s348 = ssub.s32 3, %s347
        %p349 = scmp.lt.s32.totalorder %s348, 2
        %s350 = scalar_select %p349, %s348, 2
        %s351 = smul.u32 64, %s350
        %s352 = smul.u32 2, %s24
        %s353 = ssub.s32 3, %s352
        %p354 = scmp.lt.s32.totalorder %s353, 2
        %s355 = scalar_select %p354, %s353, 2
        %s356 = smul.u32 64, %s355
        %s357 = smul.u32 2, %s24
        %s358 = ssub.s32 3, %s357
        %p359 = scmp.lt.s32.totalorder %s358, 2
        %s360 = scalar_select %p359, %s358, 2
        %s361 = smul.u32 128, %s360
        %v363 = vld [vmem:[%s297] sm:$0xf]
        %v364 = vld [vmem:[%s297 + $0x4] sm:$0xf]
        %v365 = vld [vmem:[%s306] sm:$0xf]
        %v366 = vld [vmem:[%s306 + $0x4] sm:$0xf]
        %v369 = vunpack.c.l.b16 %v363
        %v370 = vunpack.c.l.b16 %v364
        %v371 = vpack.c.b16 %v370, %v369
        %v374 = vunpack.c.l.b16 %v365
        %v375 = vunpack.c.l.b16 %v366
        %v376 = vpack.c.b16 %v375, %v374
        %377 = vrot.lane.b32.xlu0 %v376, 64
        %v378 = vpop.permute.xlu0 %377
        %vm379 = vcmask 523264
        %v382 = vsel %vm379, %v371, %v378
        %v384 = vld [vmem:[#allocation6] sm:$0xf]
        %v385 = vld [vmem:[#allocation6 + $0x4] sm:$0xf]
        %v386 = vld [vmem:[#allocation6 + $0x8] sm:$0xf]
        %v387 = vld [vmem:[#allocation6 + $0xc] sm:$0xf]
        %v388 = vld [vmem:[#allocation6 + $0x10] sm:$0xf]
        %v389 = vld [vmem:[#allocation6 + $0x14] sm:$0xf]
        %v390 = vld [vmem:[#allocation6 + $0x18] sm:$0xf]
        %v391 = vld [vmem:[#allocation6 + $0x1c] sm:$0xf]
        %v392 = vld [vmem:[#allocation6 + $0x20] sm:$0xf]
        %v393 = vld [vmem:[#allocation6 + $0x24] sm:$0xf]
        %v394 = vld [vmem:[#allocation6 + $0x28] sm:$0xf]
        %v395 = vld [vmem:[#allocation6 + $0x2c] sm:$0xf]
        %v396 = vld [vmem:[#allocation6 + $0x30] sm:$0xf]
        %v397 = vld [vmem:[#allocation6 + $0x34] sm:$0xf]
        %v398 = vld [vmem:[#allocation6 + $0x38] sm:$0xf]
        %v399 = vld [vmem:[#allocation6 + $0x3c] sm:$0xf]
        %v400 = vld [vmem:[%s3] sm:$0x1]
        %v402 = vlaneseq
        %v403 = vshrl.u32 %v402, 7
        %v404 = vsub.s32 0, %v403
        %v405 = vrot.slane %v400, %v404
        %v423 = vunpack.c.l.b16 %v384
        %v424 = vunpack.c.l.b16 %v385
        %v425 = vunpack.c.l.b16 %v386
        %v426 = vunpack.c.l.b16 %v387
        %v427 = vunpack.c.l.b16 %v388
        %v428 = vunpack.c.l.b16 %v389
        %v429 = vunpack.c.l.b16 %v390
        %v430 = vunpack.c.l.b16 %v391
        %v431 = vunpack.c.l.b16 %v392
        %v432 = vunpack.c.l.b16 %v393
        %v433 = vunpack.c.l.b16 %v394
        %v434 = vunpack.c.l.b16 %v395
        %v435 = vunpack.c.l.b16 %v396
        %v436 = vunpack.c.l.b16 %v397
        %v437 = vunpack.c.l.b16 %v398
        %v438 = vunpack.c.l.b16 %v399
        %v439 = vpack.c.b16 %v424, %v423
        %v440 = vpack.c.b16 %v426, %v425
        %v441 = vpack.c.b16 %v428, %v427
        %v442 = vpack.c.b16 %v430, %v429
        %v443 = vpack.c.b16 %v432, %v431
        %v444 = vpack.c.b16 %v434, %v433
        %v445 = vpack.c.b16 %v436, %v435
        %v446 = vpack.c.b16 %v438, %v437
        %455 = vmatprep.subr.bf16.mxu0 0
        %456 = vmatpush1.bf16.msra.mxu0 %v446
        %457 = vmatprep.subr.bf16.mxu0 0
        %458 = vmatpush1.bf16.msra.mxu0 %v445
        %459 = vmatprep.subr.bf16.mxu0 0
        %460 = vmatpush1.bf16.msra.mxu0 %v444
        %461 = vmatprep.subr.bf16.mxu0 0
        %462 = vmatpush1.bf16.msra.mxu0 %v443
        %463 = vmatprep.subr.bf16.mxu0 0
        %464 = vmatpush1.bf16.msra.mxu0 %v442
        %465 = vmatprep.subr.bf16.mxu0 0
        %466 = vmatpush1.bf16.msra.mxu0 %v441
        %467 = vmatprep.subr.bf16.mxu0 0
        %468 = vmatpush1.bf16.msra.mxu0 %v440
        %469 = vmatprep.subr.bf16.mxu0 0
        %470 = vmatpush1.bf16.msra.mxu0 %v439
        %471 = vmatprep.subr.bf16.mxu0 0
        %472 = vmatpush2.bf16.msra.mxu0 0
        %473 = vmatprep.subr.bf16.mxu0 0
        %474 = vmatpush2.bf16.msra.mxu0 0
        %475 = vmatprep.subr.bf16.mxu0 0
        %476 = vmatpush2.bf16.msra.mxu0 0
        %477 = vmatprep.subr.bf16.mxu0 0
        %478 = vmatpush2.bf16.msra.mxu0 0
        %479 = vmatprep.subr.bf16.mxu0 0
        %480 = vmatpush2.bf16.msra.mxu0 0
        %481 = vmatprep.subr.bf16.mxu0 0
        %482 = vmatpush2.bf16.msra.mxu0 0
        %483 = vmatprep.subr.bf16.mxu0 0
        %484 = vmatpush2.bf16.msra.mxu0 0
        %485 = vmatprep.subr.bf16.mxu0 0
        %486 = vmatpush2.bf16.msra.mxu0 0
        %487 = vmatprep.mubr.bf16.mxu0 0
        %488 = vmatmul.mubr.bf16.gmra.mxu0 %v382
        %v489 = vpop.f32.mrf.mxu0
        %v490 = vadd.f32 %v405, %v489
        %v491 = vpop.f32.mrf.mxu0
        %v492 = vpop.f32.mrf.mxu0
        %v493 = vadd.f32 %v405, %v492
        %v494 = vpop.f32.mrf.mxu0
        %495 = vdwg.mxu0
        %v496 = vmax.f32 %v490, 0.0
        %v497 = vmax.f32 %v493, 0.0
        %v498 = vpack.c.bf16 %v497, %v496
        %v499 = vld [vmem:[#allocation7] sm:$0xf]
        %v500 = vld [vmem:[#allocation7 + $0x4] sm:$0xf]
        %v501 = vld [vmem:[#allocation7 + $0x8] sm:$0xf]
        %v502 = vld [vmem:[#allocation7 + $0xc] sm:$0xf]
        %v503 = vld [vmem:[#allocation7 + $0x10] sm:$0xf]
        %v504 = vld [vmem:[#allocation7 + $0x14] sm:$0xf]
        %v505 = vld [vmem:[#allocation7 + $0x18] sm:$0xf]
        %v506 = vld [vmem:[#allocation7 + $0x1c] sm:$0xf]
        %v507 = vld [vmem:[#allocation7 + $0x20] sm:$0xf]
        %v508 = vld [vmem:[#allocation7 + $0x24] sm:$0xf]
        %v509 = vld [vmem:[#allocation7 + $0x28] sm:$0xf]
        %v510 = vld [vmem:[#allocation7 + $0x2c] sm:$0xf]
        %v511 = vld [vmem:[#allocation7 + $0x30] sm:$0xf]
        %v512 = vld [vmem:[#allocation7 + $0x34] sm:$0xf]
        %v513 = vld [vmem:[#allocation7 + $0x38] sm:$0xf]
        %v514 = vld [vmem:[#allocation7 + $0x3c] sm:$0xf]
        %v515 = vld [vmem:[%s5] sm:$0x1]
        %v517 = vlaneseq
        %v518 = vshrl.u32 %v517, 7
        %v519 = vsub.s32 0, %v518
        %v520 = vrot.slane %v515, %v519
        %v538 = vunpack.c.l.b16 %v499
        %v539 = vunpack.c.l.b16 %v500
        %v540 = vunpack.c.l.b16 %v501
        %v541 = vunpack.c.l.b16 %v502
        %v542 = vunpack.c.l.b16 %v503
        %v543 = vunpack.c.l.b16 %v504
        %v544 = vunpack.c.l.b16 %v505
        %v545 = vunpack.c.l.b16 %v506
        %v546 = vunpack.c.l.b16 %v507
        %v547 = vunpack.c.l.b16 %v508
        %v548 = vunpack.c.l.b16 %v509
        %v549 = vunpack.c.l.b16 %v510
        %v550 = vunpack.c.l.b16 %v511
        %v551 = vunpack.c.l.b16 %v512
        %v552 = vunpack.c.l.b16 %v513
        %v553 = vunpack.c.l.b16 %v514
        %v554 = vpack.c.b16 %v539, %v538
        %v555 = vpack.c.b16 %v541, %v540
        %v556 = vpack.c.b16 %v543, %v542
        %v557 = vpack.c.b16 %v545, %v544
        %v558 = vpack.c.b16 %v547, %v546
        %v559 = vpack.c.b16 %v549, %v548
        %v560 = vpack.c.b16 %v551, %v550
        %v561 = vpack.c.b16 %v553, %v552
        %570 = vmatprep.subr.bf16.mxu0 0
        %571 = vmatpush1.bf16.msra.mxu0 %v561
        %572 = vmatprep.subr.bf16.mxu0 0
        %573 = vmatpush1.bf16.msra.mxu0 %v560
        %574 = vmatprep.subr.bf16.mxu0 0
        %575 = vmatpush1.bf16.msra.mxu0 %v559
        %576 = vmatprep.subr.bf16.mxu0 0
        %577 = vmatpush1.bf16.msra.mxu0 %v558
        %578 = vmatprep.subr.bf16.mxu0 0
        %579 = vmatpush1.bf16.msra.mxu0 %v557
        %580 = vmatprep.subr.bf16.mxu0 0
        %581 = vmatpush1.bf16.msra.mxu0 %v556
        %582 = vmatprep.subr.bf16.mxu0 0
        %583 = vmatpush1.bf16.msra.mxu0 %v555
        %584 = vmatprep.subr.bf16.mxu0 0
        %585 = vmatpush1.bf16.msra.mxu0 %v554
        %586 = vmatprep.subr.bf16.mxu0 0
        %587 = vmatpush2.bf16.msra.mxu0 0
        %588 = vmatprep.subr.bf16.mxu0 0
        %589 = vmatpush2.bf16.msra.mxu0 0
        %590 = vmatprep.subr.bf16.mxu0 0
        %591 = vmatpush2.bf16.msra.mxu0 0
        %592 = vmatprep.subr.bf16.mxu0 0
        %593 = vmatpush2.bf16.msra.mxu0 0
        %594 = vmatprep.subr.bf16.mxu0 0
        %595 = vmatpush2.bf16.msra.mxu0 0
        %596 = vmatprep.subr.bf16.mxu0 0
        %597 = vmatpush2.bf16.msra.mxu0 0
        %598 = vmatprep.subr.bf16.mxu0 0
        %599 = vmatpush2.bf16.msra.mxu0 0
        %600 = vmatprep.subr.bf16.mxu0 0
        %601 = vmatpush2.bf16.msra.mxu0 0
        %602 = vmatprep.mubr.bf16.mxu0 0
        %603 = vmatmul.mubr.bf16.gmra.mxu0 %v498
        %v604 = vpop.f32.mrf.mxu0
        %v605 = vadd.f32 %v520, %v604
        %v606 = vpop.f32.mrf.mxu0
        %v607 = vpop.f32.mrf.mxu0
        %v608 = vadd.f32 %v520, %v607
        %v609 = vpop.f32.mrf.mxu0
        %610 = vdwg.mxu0
        %611 = vst [vmem:[%s346] sm:$0xff] %v605
        %612 = vst [vmem:[%s346 + $0x8] sm:$0xff] %v608
        %s613 = sand.u32 %s168, 1
        %s614 = sand.u32 %s168, 1
        %s615 = smul.addr %s614, 16
        %s616 = scalar_lea.vmem [#allocation9], %s615
        // Predicated region
        $region61: #{detector_forward.1} parent=43 // pred_check
          %p617 = pneg %p178
        $region62: #{detector_forward.1} parent=43 // pred_check_branch
          %619 = sbr.rel (%p617) target = $region64
        $region63: #{detector_forward.1} parent=43 // pred_region
          %s620 = smul.u32 2, %s24
          %s621 = ssub.s32 3, %s620
          %p622 = scmp.lt.s32.totalorder %s621, 2
          %s623 = scalar_select %p622, %s621, 2
          %s624 = smul.u32 128, %s623
          %p625 = scmp.ne.s32.totalorder 0, %s624
          %s626 = smul.addr %s620, 8
          %s627 = scalar_lea.vmem %s6, %s626
          // Predicated region
          $region65: #{detector_forward.1} parent=63 // pred_check
            %p628 = pneg %p625
          $region66: #{detector_forward.1} parent=63 // pred_check_branch
            %630 = sbr.rel (%p628) target = $region68
          $region67: #{detector_forward.1} parent=63 // pred_region
            // Predicated region
            $region69: #{detector_forward.1} parent=67 // pred_check
              _
            $region70: #{detector_forward.1} parent=67 // pred_check_branch
              %632 = sbr.rel (0) target = $region72
            $region71: #{detector_forward.1} parent=67 // pred_region
              // Predicated region
              $region91: #{detector_forward.1} parent=71 // pred_check
                _
              $region92: #{detector_forward.1} parent=71 // pred_check_branch
                %684 = sbr.rel (0) target = $region94
              $region93: #{detector_forward.1} parent=71 // pred_region
                %s685 = sshrl.u32 %s623, 1
                // While loop
                $region95: #{detector_forward.1} parent=93 // loop_pre_header
                  _
                $region96: #{detector_forward.1} parent=93 // loop_header
                  %s687 = sphi 0, %s689
                  %p688 = scmp.ge.s32.totalorder %s687, %s685
                  %s692 = sphi 0, %s701
                  %s693 = sphi %s616, %s704
                  %s694 = sphi %s627, %s705
                $region97: #{detector_forward.1} parent=93 // loop_header_branch
                  %691 = sbr.rel (%p688) target = $region101
                $region98: #{detector_forward.1} parent=93 // loop_body
                  %v695 = vld [vmem:[%s693] sm:$0xff]
                  %696 = vst [vmem:[%s694] sm:$0xff] %v695
                  %v697 = vld [vmem:[%s693 + $0x8] sm:$0xff]
                  %698 = vst [vmem:[%s694 + $0x8] sm:$0xff] %v697
                  %s699 = sadd.s32 1, %s692
                  %p700 = scmp.ge.s32.totalorder %s699, %s685
                  %s701 = scalar_select %p700, 0, %s699
                  %s702 = smul.u32 %s701, 16
                  %s703 = smul.u32 %s701, 16
                  %s704 = scalar_lea.vmem %s616, %s702 [#allocation9]
                  %s705 = scalar_lea.vmem %s627, %s703
                $region99: #{detector_forward.1} parent=93 // loop_footer
                  %s689 = sadd.s32 %s687, 1
                $region100: #{detector_forward.1} parent=93 // loop_footer_branch
                  %686 = sbr.rel target = $region96
                $region101: #{detector_forward.1} parent=93 // loop_exit
                  _
                %s706 = sshrl.u32 %s623, 1
                %s707 = sand.u32 %s623, 1
                %s708 = smul.u32 %s706, 2
                %s709 = smul.u32 8, %s708
                %s710 = scalar_lea.vmem %s616, %s709 [#allocation9]
                %s711 = smul.u32 8, %s708
                %s712 = scalar_lea.vmem %s627, %s711
                // While loop
                $region102: #{detector_forward.1} parent=93 // loop_pre_header
                  _
                $region103: #{detector_forward.1} parent=93 // loop_header
                  %s714 = sphi 0, %s716
                  %p715 = scmp.ge.s32.totalorder %s714, %s707
                  %s719 = sphi 0, %s726
                  %s720 = sphi %s710, %s729
                  %s721 = sphi %s712, %s730
                $region104: #{detector_forward.1} parent=93 // loop_header_branch
                  %718 = sbr.rel (%p715) target = $region108
                $region105: #{detector_forward.1} parent=93 // loop_body
                  %v722 = vld [vmem:[%s720] sm:$0xff]
                  %723 = vst [vmem:[%s721] sm:$0xff] %v722
                  %s724 = sadd.s32 1, %s719
                  %p725 = scmp.ge.s32.totalorder %s724, %s707
                  %s726 = scalar_select %p725, 0, %s724
                  %s727 = smul.u32 %s726, 8
                  %s728 = smul.u32 %s726, 8
                  %s729 = scalar_lea.vmem %s710, %s727 [#allocation9]
                  %s730 = scalar_lea.vmem %s712, %s728
                $region106: #{detector_forward.1} parent=93 // loop_footer
                  %s716 = sadd.s32 %s714, 1
                $region107: #{detector_forward.1} parent=93 // loop_footer_branch
                  %713 = sbr.rel target = $region103
                $region108: #{detector_forward.1} parent=93 // loop_exit
                  _
              $region94: #{detector_forward.1} parent=71 // pred_fallthru
                _
              // Predicated region
              $region109: #{detector_forward.1} parent=71 // pred_check
                _
              $region110: #{detector_forward.1} parent=71 // pred_check_branch
                %732 = sbr.rel target = $region112
              $region111: #{detector_forward.1} parent=71 // pred_region
                _
              $region112: #{detector_forward.1} parent=71 // pred_fallthru
                _
            $region72: #{detector_forward.1} parent=67 // pred_fallthru
              _
            // Predicated region
            $region73: #{detector_forward.1} parent=67 // pred_check
              _
            $region74: #{detector_forward.1} parent=67 // pred_check_branch
              %634 = sbr.rel target = $region76
            $region75: #{detector_forward.1} parent=67 // pred_region
              %s636 = ssub.s32 256, 1
              %s637 = sshrl.u32 %s623, 1
              // While loop
              $region77: #{detector_forward.1} parent=75 // loop_pre_header
                _
              $region78: #{detector_forward.1} parent=75 // loop_header
                %s639 = sphi 0, %s641
                %p640 = scmp.ge.s32.totalorder %s639, %s637
                %s644 = sphi 0, %s653
                %s645 = sphi %s616, %s656
                %s646 = sphi %s627, %s657
              $region79: #{detector_forward.1} parent=75 // loop_header_branch
                %643 = sbr.rel (%p640) target = $region83
              $region80: #{detector_forward.1} parent=75 // loop_body
                %v647 = vld [vmem:[%s645] sm:%s636]
                %648 = vst [vmem:[%s646] sm:%s636] %v647
                %v649 = vld [vmem:[%s645 + $0x8] sm:%s636]
                %650 = vst [vmem:[%s646 + $0x8] sm:%s636] %v649
                %s651 = sadd.s32 1, %s644
                %p652 = scmp.ge.s32.totalorder %s651, %s637
                %s653 = scalar_select %p652, 0, %s651
                %s654 = smul.u32 %s653, 16
                %s655 = smul.u32 %s653, 16
                %s656 = scalar_lea.vmem %s616, %s654 [#allocation9]
                %s657 = scalar_lea.vmem %s627, %s655
              $region81: #{detector_forward.1} parent=75 // loop_footer
                %s641 = sadd.s32 %s639, 1
              $region82: #{detector_forward.1} parent=75 // loop_footer_branch
                %638 = sbr.rel target = $region78
              $region83: #{detector_forward.1} parent=75 // loop_exit
                _
              %s658 = sshrl.u32 %s623, 1
              %s659 = sand.u32 %s623, 1
              %s660 = smul.u32 %s658, 2
              %s661 = smul.u32 8, %s660
              %s662 = scalar_lea.vmem %s616, %s661 [#allocation9]
              %s663 = smul.u32 8, %s660
              %s664 = scalar_lea.vmem %s627, %s663
              // While loop
              $region84: #{detector_forward.1} parent=75 // loop_pre_header
                _
              $region85: #{detector_forward.1} parent=75 // loop_header
                %s666 = sphi 0, %s668
                %p667 = scmp.ge.s32.totalorder %s666, %s659
                %s671 = sphi 0, %s678
                %s672 = sphi %s662, %s681
                %s673 = sphi %s664, %s682
              $region86: #{detector_forward.1} parent=75 // loop_header_branch
                %670 = sbr.rel (%p667) target = $region90
              $region87: #{detector_forward.1} parent=75 // loop_body
                %v674 = vld [vmem:[%s672] sm:%s636]
                %675 = vst [vmem:[%s673] sm:%s636] %v674
                %s676 = sadd.s32 1, %s671
                %p677 = scmp.ge.s32.totalorder %s676, %s659
                %s678 = scalar_select %p677, 0, %s676
                %s679 = smul.u32 %s678, 8
                %s680 = smul.u32 %s678, 8
                %s681 = scalar_lea.vmem %s662, %s679 [#allocation9]
                %s682 = scalar_lea.vmem %s664, %s680
              $region88: #{detector_forward.1} parent=75 // loop_footer
                %s668 = sadd.s32 %s666, 1
              $region89: #{detector_forward.1} parent=75 // loop_footer_branch
                %665 = sbr.rel target = $region85
              $region90: #{detector_forward.1} parent=75 // loop_exit
                _
            $region76: #{detector_forward.1} parent=67 // pred_fallthru
              _
          $region68: #{detector_forward.1} parent=63 // pred_fallthru
            _
          %733 = vnop
        $region64: #{detector_forward.1} parent=43 // pred_fallthru
          _
      $region44: #{detector_forward.1} parent=5 // pred_fallthru
        _
      %p734 = scmp.le.s32.totalorder 2, %s19
      // Predicated region
      $region113: #{detector_forward.1} parent=5 // pred_check
        %p735 = pneg %p734
      $region114: #{detector_forward.1} parent=5 // pred_check_branch
        %737 = sbr.rel (%p735) target = $region116
      $region115: #{detector_forward.1} parent=5 // pred_region
        %s738 = ssub.s32 %s19, 2
        // Predicated region
        $region117: #{detector_forward.1} parent=115 // pred_check
          %p739 = pneg %p184
        $region118: #{detector_forward.1} parent=115 // pred_check_branch
          %741 = sbr.rel (%p739) target = $region120
        $region119: #{detector_forward.1} parent=115 // pred_region
          %s742 = sand.u32 %s169, 1
          %s743 = sand.u32 %s169, 1
          %s744 = smul.addr %s743, 16
          %s745 = scalar_lea.vmem [#allocation9], %s744
        $region120: #{detector_forward.1} parent=115 // pred_fallthru
          _
      $region116: #{detector_forward.1} parent=5 // pred_fallthru
        _
    $region6: #{detector_forward.1} parent=1 // loop_footer
      %s23 = sadd.s32 1, %s19
    $region7: #{detector_forward.1} parent=1 // loop_footer_branch
      %18 = sbr.rel target = $region3
    $region8: #{detector_forward.1} parent=1 // loop_exit
      _
    %746 = vsyncpa [#allocation3], 1
    %s747 = scalar_lea.sflag [#allocation3], 1
    %748 = vsyncpa %s747, 1
    %749 = vsyncpa [#allocation5], 1
    %s750 = scalar_lea.sflag [#allocation5], 1
    %751 = vsyncpa %s750, 1
    %752 = vsyncpa [#allocation8], 1

</llo_original>
